<compile_context>
chip_gen: v6e
topology: v6e:2x2x1
jax: 0.10.0
libtpu: 0.0.40
codegen_flags: <defaults>
</compile_context>

<pallas_src>
import jax
import jax.numpy as jnp
import numpy as np
from jax.experimental import pallas as pl
from jax.experimental.pallas import tpu as pltpu


def _round_up(x, m):
    return ((x + m - 1) // m) * m


def _require_embedding_kernel(x_ref, w_ref, b_ref, o_ref):
    # x_ref: (tmf, f*Dr)  w_ref: (f*Dr, f*Dh)  b_ref: (1, f*Dh)  o_ref: (tmf, f*Dh)
    y = jnp.dot(x_ref[...], w_ref[...], preferred_element_type=jnp.float32)
    o_ref[...] = jnp.maximum(y + b_ref[...], 0.0).astype(o_ref.dtype)


def _choose_fold(M, Dr, Dh, lane=128, max_weight_bytes=2 << 20):
    """Smallest f with f | M making both folded feature dims lane-dense
    (>=128), capped so the block-diagonal weight stays small."""
    f = 1
    for cand in range(1, 65):
        if M % cand:
            continue
        if (cand * Dr) * (cand * Dh) * 4 > max_weight_bytes:
            break
        f = cand
        if cand * Dr >= lane and cand * Dh >= lane:
            break
    return f


def _choose_row_block(Mf, f, Dr, Dh, stream_budget_bytes=24 << 20):
    """Folded-row block size (multiple of 8 when grid > 1) and grid length."""
    if Mf <= 16:                          # tiny input: one full-extent block
        return Mf, 1
    per_row = 2 * 4 * f * (Dr + Dh)       # double-buffered in+out bytes / folded row
    cap = max(8, (stream_budget_bytes // per_row) // 8 * 8)
    # at least 2 blocks so the "parallel" axis can shard across v7x's 2 TCs
    tmf = min(cap, _round_up(pl.cdiv(Mf, 2), 8))
    tmf = max(8, (tmf // 8) * 8)
    return tmf, pl.cdiv(Mf, tmf)


def require_embedding_pallas(xr, w, b):
    """xr: (B, S, Dr) f32; w: (Dr, Dh) (= torch conv weight[:, :, 0].T); b: (1, Dh)."""
    B, S, Dr = xr.shape
    Dh = w.shape[1]
    M = B * S

    f = _choose_fold(M, Dr, Dh)
    Mf = M // f

    # Row-major reshape: contiguous, no HBM copy.
    xf = xr.reshape(Mf, f * Dr)
    # Block-diagonal weight / tiled bias: one wide matmul == f pointwise linears.
    wf = jnp.kron(jnp.eye(f, dtype=w.dtype), w)        # (f*Dr, f*Dh)
    bf = jnp.tile(b, (1, f))                           # (1, f*Dh)

    tmf, grid_m = _choose_row_block(Mf, f, Dr, Dh)

    # Explicit VMEM budget: double-buffered streamed tiles + resident weight/bias.
    stream_bytes = 2 * tmf * f * (Dr + Dh) * 4
    resident_bytes = 2 * (f * Dr) * (f * Dh) * 4 + 2 * (f * Dh) * 4
    vmem_limit = int(min(64 << 20,
                         max(32 << 20, stream_bytes + resident_bytes + (8 << 20))))

    cost = pl.CostEstimate(
        flops=2 * Mf * (f * Dr) * (f * Dh),
        transcendentals=0,
        bytes_accessed=4 * (M * Dr + M * Dh + (f * Dr) * (f * Dh) + f * Dh),
    )

    out_f = pl.pallas_call(
        _require_embedding_kernel,
        out_shape=jax.ShapeDtypeStruct((Mf, f * Dh), xr.dtype),
        grid=(grid_m,),
        in_specs=[
            pl.BlockSpec((tmf, f * Dr), lambda i: (i, 0)),      # streamed rows
            pl.BlockSpec((f * Dr, f * Dh), lambda i: (0, 0)),   # resident weight
            pl.BlockSpec((1, f * Dh), lambda i: (0, 0)),        # resident bias
        ],
        out_specs=pl.BlockSpec((tmf, f * Dh), lambda i: (i, 0)),
        compiler_params=pltpu.CompilerParams(
            dimension_semantics=("parallel",),
            vmem_limit_bytes=vmem_limit,
        ),
        cost_estimate=cost,
    )(xf, wf, bf)

    # Contiguous reshape back to (B, S, Dh): free.
    return out_f.reshape(B, S, Dh)


def require_embedding_ref(xr, w, b):
    """Pure-JAX reference mirroring the PyTorch forward (Conv1d k=1 + ReLU)."""
    return jnp.maximum(jnp.einsum("bsd,dh->bsh", xr, w) + b, 0.0)


if __name__ == "__main__":
    B, S = 2, 8                       # batch, sequence length
    DIM_REQUIRE, DIM_HIDDEN = 16, 32

    key = jax.random.PRNGKey(0)
    kx, kw, kb = jax.random.split(key, 3)
    xr = jax.random.normal(kx, (B, S, DIM_REQUIRE), jnp.float32)
    # torch Conv1d weight (Dh, Dr, 1) stored transposed as (Dr, Dh); bias (1, Dh).
    w = 0.1 * jax.random.normal(kw, (DIM_REQUIRE, DIM_HIDDEN), jnp.float32)
    b = 0.1 * jax.random.normal(kb, (1, DIM_HIDDEN), jnp.float32)

    out = jax.block_until_ready(require_embedding_pallas(xr, w, b))
    ref = require_embedding_ref(xr, w, b)
    np.testing.assert_allclose(np.asarray(out), np.asarray(ref),
                               atol=1e-5, rtol=1e-5)

    print("KERNEL_OK")
</pallas_src>

<mosaic_0001>
module attributes {stable_mosaic.version = 11 : i64} {
  func.func @_require_embedding_kernel(%arg0: i32, %arg1: memref<2x128xf32, #tpu.memory_space<vmem>>, %arg2: memref<128x256xf32, #tpu.memory_space<vmem>>, %arg3: memref<1x256xf32, #tpu.memory_space<vmem>>, %arg4: memref<2x256xf32, #tpu.memory_space<vmem>>) attributes {dimension_semantics = [#tpu.dimension_semantics<parallel>], iteration_bounds = array<i64: 1>, scalar_prefetch = 0 : i64, scratch_operands = 0 : i64, tpu.core_type = #tpu.core_type<tc>, window_params = [{transform_indices = @transform_0, window_bounds = array<i64: 2, 128>}, {pipeline_mode = #tpu.pipeline_mode<synchronous>, transform_indices = @transform_1, window_bounds = array<i64: 128, 256>}, {pipeline_mode = #tpu.pipeline_mode<synchronous>, transform_indices = @transform_2, window_bounds = array<i64: 1, 256>}, {transform_indices = @transform_3, window_bounds = array<i64: 2, 256>}]} {
    %c0 = arith.constant 0 : index
    %c0_0 = arith.constant 0 : index
    %0 = vector.load %arg1[%c0, %c0_0] : memref<2x128xf32, #tpu.memory_space<vmem>>, vector<2x128xf32>
    %c0_1 = arith.constant 0 : index
    %c0_2 = arith.constant 0 : index
    %1 = vector.load %arg2[%c0_1, %c0_2] : memref<128x256xf32, #tpu.memory_space<vmem>>, vector<128x256xf32>
    %cst = arith.constant dense<0.000000e+00> : vector<2x256xf32>
    %2 = tpu.matmul %0, %1, %cst {dimension_numbers = #tpu.dot_dimension_numbers<[1], [0], [0], [1], [0, 0, 1, 1], [], []>} : vector<2x128xf32>, vector<128x256xf32>, vector<2x256xf32> -> vector<2x256xf32>
    %c0_3 = arith.constant 0 : index
    %c0_4 = arith.constant 0 : index
    %3 = vector.load %arg3[%c0_3, %c0_4] : memref<1x256xf32, #tpu.memory_space<vmem>>, vector<1x256xf32>
    %4 = vector.broadcast %3 : vector<1x256xf32> to vector<2x256xf32>
    %5 = arith.addf %2, %4 : vector<2x256xf32>
    %cst_5 = arith.constant 0.000000e+00 : f32
    %6 = vector.broadcast %cst_5 : f32 to vector<2x256xf32>
    %7 = arith.maximumf %5, %6 : vector<2x256xf32>
    %c0_6 = arith.constant 0 : index
    %c0_7 = arith.constant 0 : index
    %8 = vector.load %arg4[%c0_6, %c0_7] : memref<2x256xf32, #tpu.memory_space<vmem>>, vector<2x256xf32>
    tpu.vector_store %arg4[%c0_6, %c0_7], %7 {strides = array<i32>} : memref<2x256xf32, #tpu.memory_space<vmem>>, vector<2x256xf32>,
    return
  }
  func.func @transform_0(%arg0: i32) -> (i32, i32) {
    %c0_i32 = arith.constant 0 : i32
    %c0_i32_0 = arith.constant 0 : i32
    return %arg0, %c0_i32 : i32, i32
  }
  func.func @transform_1(%arg0: i32) -> (i32, i32) {
    %c0_i32 = arith.constant 0 : i32
    %c0_i32_0 = arith.constant 0 : i32
    %c0_i32_1 = arith.constant 0 : i32
    return %c0_i32, %c0_i32_0 : i32, i32
  }
  func.func @transform_2(%arg0: i32) -> (i32, i32) {
    %c0_i32 = arith.constant 0 : i32
    %c0_i32_0 = arith.constant 0 : i32
    %c0_i32_1 = arith.constant 0 : i32
    return %c0_i32, %c0_i32_0 : i32, i32
  }
  func.func @transform_3(%arg0: i32) -> (i32, i32) {
    %c0_i32 = arith.constant 0 : i32
    %c0_i32_0 = arith.constant 0 : i32
    return %arg0, %c0_i32 : i32, i32
  }
}

</mosaic_0001>

<llo_original>
// kernel: tpu_custom_call.1
$region0: #{tpu_custom_call.1}
  #allocation0 [shape = 'u32[]', space=smem, size = 0x4, offset = 0x4, fixed_abs, tag = 'smem constant byte address 0x4 - core index']
  #allocation1 [shape = 'u32[144,128]{1,0:T(1,128)}', space=vmem, size = 0x12000, scoped, tag = 'internal scratch']
  %s0 = inlined_call_operand.hbm [shape: f32[2,128], index: 0, kind: input, shape index: {}]
  %s1 = inlined_call_operand.hbm [shape: f32[128,256], index: 1, kind: input, shape index: {}]
  %s2 = inlined_call_operand.vmem [shape: f32[1,256], index: 2, kind: input, shape index: {}]
  %s3 = inlined_call_operand.hbm [shape: f32[2,256], index: 3, kind: output, shape index: {}]
  %s4 = sld [smem:[#allocation0]]
  $region30: #{tpu_custom_call.1} parent=0
    _
  %s6 = ssub.s32 1, %s4
  %s7 = scalar_select 0, %s6, %s4
  $region1: #{tpu_custom_call.1} parent=0
    #allocation2 [shape = 'u8[1024]{0}', space=vmem, size = 0x400, scoped, tag = 'input window, operand 0, single buffered']
    #allocation3 [shape = 's32[1]{0}', space=sflag, size = 0x4, scoped, tag = 'scoped memory for tpu_custom_call.1']
    #allocation4 [shape = 's32[1]{0}', space=sflag, size = 0x4, scoped, tag = 'scoped memory for tpu_custom_call.1']
    #allocation5 [shape = 'u8[131072]{0}', space=vmem, size = 0x20000, scoped, tag = 'input window, operand 1, single buffered']
    #allocation6 [shape = 's32[1]{0}', space=sflag, size = 0x4, scoped, tag = 'scoped memory for tpu_custom_call.1']
    #allocation7 [shape = 'u8[2048]{0}', space=vmem, size = 0x800, scoped, tag = 'output window, operand 0, single buffered']
    %8 = vsyncpa [#allocation3], 0
    %9 = vsyncpa [#allocation6], 0
    %10 = vsyncpa [#allocation4], 0
    // Predicated region
    $region2: #{tpu_custom_call.1} parent=1 // pred_check
      _
    $region3: #{tpu_custom_call.1} parent=1 // pred_check_branch
      %12 = sbr.rel (0) target = $region5
    $region4: #{tpu_custom_call.1} parent=1 // pred_region
      %s14 = ssub.s32 32, 32
      %15 = vsyncadd [#allocation3], %s14
      %s17 = sshll.u32 [#allocation2], 4
      %s18 = int_to_ptr.vmem [resolvable:$true] %s17
      %20 = dma.hbm_to_vmem [thread:$0]  %s0, 32, %s18, [#allocation3]
    $region5: #{tpu_custom_call.1} parent=1 // pred_fallthru
      _
    // Predicated region
    $region6: #{tpu_custom_call.1} parent=1 // pred_check
      _
    $region7: #{tpu_custom_call.1} parent=1 // pred_check_branch
      %22 = sbr.rel (0) target = $region9
    $region8: #{tpu_custom_call.1} parent=1 // pred_region
      %s24 = ssub.s32 4096, 4096
      %25 = vsyncadd [#allocation6], %s24
      %s26 = sshll.u32 [#allocation5], 4
      %s27 = int_to_ptr.vmem [resolvable:$true] %s26
      %32 = dma.hbm_to_vmem [thread:$0]  %s1, 4096, %s27, [#allocation6], 256, 256, 16
    $region9: #{tpu_custom_call.1} parent=1 // pred_fallthru
      _
    // Predicated region
    $region10: #{tpu_custom_call.1} parent=1 // pred_check
      _
    $region11: #{tpu_custom_call.1} parent=1 // pred_check_branch
      %34 = sbr.rel (0) target = $region13
    $region12: #{tpu_custom_call.1} parent=1 // pred_region
      _
    $region13: #{tpu_custom_call.1} parent=1 // pred_fallthru
      _
    // Predicated region
    $region14: #{tpu_custom_call.1} parent=1 // pred_check
      _
    $region15: #{tpu_custom_call.1} parent=1 // pred_check_branch
      %36 = sbr.rel (0) target = $region17
    $region16: #{tpu_custom_call.1} parent=1 // pred_region
      %37 = dma.done [#allocation3], 32
    $region17: #{tpu_custom_call.1} parent=1 // pred_fallthru
      _
    // Predicated region
    $region18: #{tpu_custom_call.1} parent=1 // pred_check
      _
    $region19: #{tpu_custom_call.1} parent=1 // pred_check_branch
      %39 = sbr.rel (0) target = $region21
    $region20: #{tpu_custom_call.1} parent=1 // pred_region
      %40 = dma.done [#allocation6], 4096
    $region21: #{tpu_custom_call.1} parent=1 // pred_fallthru
      _
    %v41 = vld [vmem:[#allocation2] sm:$0x3]
    %v42 = vld [vmem:[#allocation5] sm:$0xff]
    %v43 = vld [vmem:[#allocation5 + $0x8] sm:$0xff]
    %v44 = vld [vmem:[#allocation5 + $0x10] sm:$0xff]
    %v45 = vld [vmem:[#allocation5 + $0x18] sm:$0xff]
    %v46 = vld [vmem:[#allocation5 + $0x20] sm:$0xff]
    %v47 = vld [vmem:[#allocation5 + $0x28] sm:$0xff]
    %v48 = vld [vmem:[#allocation5 + $0x30] sm:$0xff]
    %v49 = vld [vmem:[#allocation5 + $0x38] sm:$0xff]
    %v50 = vld [vmem:[#allocation5 + $0x40] sm:$0xff]
    %v51 = vld [vmem:[#allocation5 + $0x48] sm:$0xff]
    %v52 = vld [vmem:[#allocation5 + $0x50] sm:$0xff]
    %v53 = vld [vmem:[#allocation5 + $0x58] sm:$0xff]
    %v54 = vld [vmem:[#allocation5 + $0x60] sm:$0xff]
    %v55 = vld [vmem:[#allocation5 + $0x68] sm:$0xff]
    %v56 = vld [vmem:[#allocation5 + $0x70] sm:$0xff]
    %v57 = vld [vmem:[#allocation5 + $0x78] sm:$0xff]
    %v58 = vld [vmem:[#allocation5 + $0x80] sm:$0xff]
    %v59 = vld [vmem:[#allocation5 + $0x88] sm:$0xff]
    %v60 = vld [vmem:[#allocation5 + $0x90] sm:$0xff]
    %v61 = vld [vmem:[#allocation5 + $0x98] sm:$0xff]
    %v62 = vld [vmem:[#allocation5 + $0xa0] sm:$0xff]
    %v63 = vld [vmem:[#allocation5 + $0xa8] sm:$0xff]
    %v64 = vld [vmem:[#allocation5 + $0xb0] sm:$0xff]
    %v65 = vld [vmem:[#allocation5 + $0xb8] sm:$0xff]
    %v66 = vld [vmem:[#allocation5 + $0xc0] sm:$0xff]
    %v67 = vld [vmem:[#allocation5 + $0xc8] sm:$0xff]
    %v68 = vld [vmem:[#allocation5 + $0xd0] sm:$0xff]
    %v69 = vld [vmem:[#allocation5 + $0xd8] sm:$0xff]
    %v70 = vld [vmem:[#allocation5 + $0xe0] sm:$0xff]
    %v71 = vld [vmem:[#allocation5 + $0xe8] sm:$0xff]
    %v72 = vld [vmem:[#allocation5 + $0xf0] sm:$0xff]
    %v73 = vld [vmem:[#allocation5 + $0xf8] sm:$0xff]
    %v74 = vld [vmem:[%s2] sm:$0x3]
    %v76 = vlaneseq
    %v77 = vshrl.u32 %v76, 7
    %v78 = vsub.s32 0, %v77
    %v79 = vrot.slane %v74, %v78
    %v80 = vlaneseq
    %v81 = vshrl.u32 %v80, 7
    %v82 = vsub.s32 1, %v81
    %v83 = vrot.slane %v74, %v82
    %86 = vmatprep.subr.mxu0 %v73
    %87 = vmatpush1.msra.mxu0 %v72
    %88 = vmatprep.subr.mxu0 %v71
    %89 = vmatpush1.msra.mxu0 %v70
    %90 = vmatprep.subr.mxu0 %v69
    %91 = vmatpush1.msra.mxu0 %v68
    %92 = vmatprep.subr.mxu0 %v67
    %93 = vmatpush1.msra.mxu0 %v66
    %94 = vmatprep.subr.mxu0 %v65
    %95 = vmatpush1.msra.mxu0 %v64
    %96 = vmatprep.subr.mxu0 %v63
    %97 = vmatpush1.msra.mxu0 %v62
    %98 = vmatprep.subr.mxu0 %v61
    %99 = vmatpush1.msra.mxu0 %v60
    %100 = vmatprep.subr.mxu0 %v59
    %101 = vmatpush1.msra.mxu0 %v58
    %102 = vmatprep.subr.mxu0 %v57
    %103 = vmatpush1.msra.mxu0 %v56
    %104 = vmatprep.subr.mxu0 %v55
    %105 = vmatpush1.msra.mxu0 %v54
    %106 = vmatprep.subr.mxu0 %v53
    %107 = vmatpush1.msra.mxu0 %v52
    %108 = vmatprep.subr.mxu0 %v51
    %109 = vmatpush1.msra.mxu0 %v50
    %110 = vmatprep.subr.mxu0 %v49
    %111 = vmatpush1.msra.mxu0 %v48
    %112 = vmatprep.subr.mxu0 %v47
    %113 = vmatpush1.msra.mxu0 %v46
    %114 = vmatprep.subr.mxu0 %v45
    %115 = vmatpush1.msra.mxu0 %v44
    %116 = vmatprep.subr.mxu0 %v43
    %117 = vmatpush1.msra.mxu0 %v42
    %118 = vmatprep.subr.mxu0 0.0
    %119 = vmatpush2.msra.mxu0 0.0
    %120 = vmatprep.subr.mxu0 0.0
    %121 = vmatpush2.msra.mxu0 0.0
    %122 = vmatprep.subr.mxu0 0.0
    %123 = vmatpush2.msra.mxu0 0.0
    %124 = vmatprep.subr.mxu0 0.0
    %125 = vmatpush2.msra.mxu0 0.0
    %126 = vmatprep.subr.mxu0 0.0
    %127 = vmatpush2.msra.mxu0 0.0
    %128 = vmatprep.subr.mxu0 0.0
    %129 = vmatpush2.msra.mxu0 0.0
    %130 = vmatprep.subr.mxu0 0.0
    %131 = vmatpush2.msra.mxu0 0.0
    %132 = vmatprep.subr.mxu0 0.0
    %133 = vmatpush2.msra.mxu0 0.0
    %134 = vmatprep.subr.mxu0 0.0
    %135 = vmatpush2.msra.mxu0 0.0
    %136 = vmatprep.subr.mxu0 0.0
    %137 = vmatpush2.msra.mxu0 0.0
    %138 = vmatprep.subr.mxu0 0.0
    %139 = vmatpush2.msra.mxu0 0.0
    %140 = vmatprep.subr.mxu0 0.0
    %141 = vmatpush2.msra.mxu0 0.0
    %142 = vmatprep.subr.mxu0 0.0
    %143 = vmatpush2.msra.mxu0 0.0
    %144 = vmatprep.subr.mxu0 0.0
    %145 = vmatpush2.msra.mxu0 0.0
    %146 = vmatprep.subr.mxu0 0.0
    %147 = vmatpush2.msra.mxu0 0.0
    %148 = vmatprep.subr.mxu0 0.0
    %149 = vmatpush2.msra.mxu0 0.0
    %150 = vmatprep.mubr.f32.mxu0 0.0
    %151 = vmatmul.mubr.f32.gmra.mxu0 %v41
    %v152 = vpop.f32.mrf.mxu0
    %v153 = vadd.f32 %v79, %v152
    %v154 = vpop.f32.mrf.mxu0
    %v155 = vadd.f32 %v83, %v154
    %156 = vdwg.mxu0
    %v157 = vmax.f32 %v153, 0.0
    %v158 = vmax.f32 %v155, 0.0
    %v161 = vcombine.low %v157, %v158
    %v163 = vunpack.c.l.s4 1983009808
    %v164 = vunpack.c.0.s8 %v163
    %v165 = vlaneseq
    %v166 = vshrl.u32 %v165, 7
    %v167 = vsub.s32 %v164, %v166
    %v168 = vrot.slane %v161, %v167
    %170 = vst [vmem:[#allocation7] sm:$0xf] %v168
    // Predicated region
    $region22: #{tpu_custom_call.1} parent=1 // pred_check
      _
    $region23: #{tpu_custom_call.1} parent=1 // pred_check_branch
      %172 = sbr.rel (0) target = $region25
    $region24: #{tpu_custom_call.1} parent=1 // pred_region
      %s174 = ssub.s32 64, 64
      %175 = vsyncadd [#allocation4], %s174
      %s177 = sshll.u32 [#allocation7], 4
      %s178 = int_to_ptr.vmem [resolvable:$true] %s177
      %180 = dma.vmem_to_hbm [thread:$0]  %s178, 64, %s3, [#allocation4]
    $region25: #{tpu_custom_call.1} parent=1 // pred_fallthru
      _
    // Predicated region
    $region26: #{tpu_custom_call.1} parent=1 // pred_check
      _
    $region27: #{tpu_custom_call.1} parent=1 // pred_check_branch
      %182 = sbr.rel (0) target = $region29
    $region28: #{tpu_custom_call.1} parent=1 // pred_region
      %183 = dma.done [#allocation4], 64
    $region29: #{tpu_custom_call.1} parent=1 // pred_fallthru
      _
    %184 = vsyncpa [#allocation3], 1
    %185 = vsyncpa [#allocation6], 1
    %186 = vsyncpa [#allocation4], 1

</llo_original>
